<compile_context>
chip_gen: v7x
topology: tpu7x:2x2x1
jax: 0.10.0
libtpu: 0.0.40
codegen_flags: <defaults>
</compile_context>

<pallas_src>
import functools

import jax
import jax.numpy as jnp
from jax.experimental import pallas as pl
from jax.experimental.pallas import tpu as pltpu


def _round_up(x, m):
    return (x + m - 1) // m * m


def _gemm_bn_act_single_kernel(x_ref, w_ref, scale_ref, bias_ref, o_ref,
                               *, neg_slope, act):
    """Single-shot path: whole contraction dim in one MXU GEMM per output tile.

    x_ref:     (TM, TK)   bf16 im2col activations (zero-padded columns)
    w_ref:     (TK, TN)   bf16 im2col weights (zero rows in padding)
    scale_ref: (1, TN)    f32 folded BN scale  = gamma / sqrt(var + eps)
    bias_ref:  (1, TN)    f32 folded bias      = (conv_b - mean)*scale + beta
    o_ref:     (TM, TN)   lane-dense output tile (TN multiple of 128)
    """
    acc = jnp.dot(x_ref[...], w_ref[...],
                  preferred_element_type=jnp.float32)      # single MXU GEMM
    y = acc * scale_ref[...] + bias_ref[...]               # fused eval-mode BN
    if act:
        y = jnp.where(y > 0, y, neg_slope * y)             # LeakyReLU(0.1)
    o_ref[...] = y.astype(o_ref.dtype)


def _gemm_bn_act_ktiled_kernel(x_ref, w_ref, scale_ref, bias_ref, o_ref,
                               acc_ref, *, neg_slope, act):
    """K-tiled path: f32 accumulator across the last ('arbitrary') grid axis."""
    kk = pl.program_id(2)

    @pl.when(kk == 0)
    def _():
        acc_ref[...] = jnp.zeros_like(acc_ref)

    acc_ref[...] += jnp.dot(x_ref[...], w_ref[...],
                            preferred_element_type=jnp.float32)

    @pl.when(kk == pl.num_programs(2) - 1)
    def _():
        y = acc_ref[...] * scale_ref[...] + bias_ref[...]
        if act:
            y = jnp.where(y > 0, y, neg_slope * y)
        o_ref[...] = y.astype(o_ref.dtype)


def conv_forward(x_nchw, params, *, k=1, p=0, s=1, d=1, g=1, act=True,
                 eps=1e-5, compute_dtype=jnp.bfloat16,
                 tile_m=256, tile_n=128, tile_k=512, max_single_k=2048):
    """Forward pass of `Conv` (Conv2d + BatchNorm2d[eval] + LeakyReLU(0.1))."""
    # TODO(synk): groups != 1 (grouped conv) is not implemented in the kernel.
    assert g == 1, "kernel supports g=1 (module default)"
    w, b, gamma, beta, rmean, rvar = params                # PyTorch-shaped params
    N, C_in, H, W = x_nchw.shape
    C_out = w.shape[0]
    OH = (H + 2 * p - d * (k - 1) - 1) // s + 1
    OW = (W + 2 * p - d * (k - 1) - 1) // s + 1

    # ---- im2col in the wrapper (layout glue; the GEMM lives in the kernel) ----
    x_pad = jnp.pad(jnp.transpose(x_nchw, (0, 2, 3, 1)),           # NHWC
                    ((0, 0), (p, p), (p, p), (0, 0)))
    cols = []
    for kh in range(k):
        for kw in range(k):
            r0, c0 = kh * d, kw * d
            cols.append(x_pad[:, r0:r0 + s * (OH - 1) + 1:s,
                              c0:c0 + s * (OW - 1) + 1:s, :])
    x_col = jnp.concatenate(cols, axis=-1)                 # (N, OH, OW, K*K*Cin)

    M = N * OH * OW
    KKC = k * k * C_in

    TN = tile_n                                            # 128: native MXU lane tile
    Cout_pad = _round_up(C_out, TN)

    KKC_128 = _round_up(KKC, 128)
    TK = KKC_128 if KKC_128 <= max_single_k else tile_k
    KKC_pad = _round_up(KKC, TK)
    grid_k = KKC_pad // TK

    TM = min(tile_m, _round_up(M, 8))
    M_pad = _round_up(M, TM)

    x_col_p = jnp.pad(x_col.reshape(M, KKC).astype(compute_dtype),
                      ((0, M_pad - M), (0, KKC_pad - KKC)))
    w_col = jnp.transpose(w, (2, 3, 1, 0)).reshape(KKC, C_out)     # (kh,kw,cin) x cout
    w_p = jnp.pad(w_col.astype(compute_dtype),
                  ((0, KKC_pad - KKC), (0, Cout_pad - C_out)))

    # Fold BatchNorm (eval mode) + conv bias into a per-channel scale/bias.
    scale = (gamma / jnp.sqrt(rvar + eps)).astype(jnp.float32)
    bias = ((b - rmean) * scale + beta).astype(jnp.float32)
    scale_p = jnp.pad(scale, (0, Cout_pad - C_out)).reshape(1, Cout_pad)
    bias_p = jnp.pad(bias, (0, Cout_pad - C_out)).reshape(1, Cout_pad)

    out_dtype = x_nchw.dtype
    out_itemsize = jnp.dtype(out_dtype).itemsize

    cost = pl.CostEstimate(
        flops=2 * M * KKC * C_out + 3 * M * C_out,
        transcendentals=0,
        bytes_accessed=(M_pad * KKC_pad * 2 + KKC_pad * Cout_pad * 2
                        + M_pad * Cout_pad * out_itemsize + 2 * Cout_pad * 4))

    if grid_k == 1:
        kernel = functools.partial(_gemm_bn_act_single_kernel,
                                   neg_slope=0.1, act=act)
        grid = (M_pad // TM, Cout_pad // TN)
        in_specs = [
            pl.BlockSpec((TM, TK), lambda i, j: (i, 0)),
            pl.BlockSpec((TK, TN), lambda i, j: (0, j)),
            pl.BlockSpec((1, TN), lambda i, j: (0, j)),
            pl.BlockSpec((1, TN), lambda i, j: (0, j)),
        ]
        out_specs = pl.BlockSpec((TM, TN), lambda i, j: (i, j))
        scratch_shapes = []
        dim_sem = ("parallel", "parallel")
    else:
        kernel = functools.partial(_gemm_bn_act_ktiled_kernel,
                                   neg_slope=0.1, act=act)
        grid = (M_pad // TM, Cout_pad // TN, grid_k)       # reduction axis last
        in_specs = [
            pl.BlockSpec((TM, TK), lambda i, j, kk: (i, kk)),
            pl.BlockSpec((TK, TN), lambda i, j, kk: (kk, j)),
            pl.BlockSpec((1, TN), lambda i, j, kk: (0, j)),
            pl.BlockSpec((1, TN), lambda i, j, kk: (0, j)),
        ]
        out_specs = pl.BlockSpec((TM, TN), lambda i, j, kk: (i, j))
        scratch_shapes = [pltpu.VMEM((TM, TN), jnp.float32)]
        dim_sem = ("parallel", "parallel", "arbitrary")

    # Explicit VMEM budget: double-buffered in/out tiles + accumulator + params.
    bytes_per_step = (2 * TM * TK * 2 + 2 * TK * TN * 2
                      + 2 * TM * TN * out_itemsize + TM * TN * 4 + 4 * TN * 4)
    vmem_limit = int(min(max(4 * bytes_per_step, 8 << 20), 32 << 20))

    out_padded = pl.pallas_call(
        kernel,
        out_shape=jax.ShapeDtypeStruct((M_pad, Cout_pad), out_dtype),
        grid_spec=pltpu.PrefetchScalarGridSpec(
            num_scalar_prefetch=0,
            grid=grid,
            in_specs=in_specs,
            out_specs=out_specs,
            scratch_shapes=scratch_shapes,
        ),
        compiler_params=pltpu.CompilerParams(
            dimension_semantics=dim_sem,
            vmem_limit_bytes=vmem_limit),
        cost_estimate=cost,
    )(x_col_p, w_p, scale_p, bias_p)

    out = out_padded[:M, :C_out].reshape(N, OH, OW, C_out)
    return jnp.transpose(out, (0, 3, 1, 2))                # back to NCHW


def _reference(x_nchw, params, *, k, p, s=1, d=1, act=True, eps=1e-5,
               compute_dtype=jnp.bfloat16):
    """Plain-JAX reference (NCHW), PyTorch eval-mode semantics, same bf16 cast."""
    w, b, gamma, beta, rmean, rvar = params
    y = jax.lax.conv_general_dilated(
        x_nchw.astype(compute_dtype), w.astype(compute_dtype),
        window_strides=(s, s), padding=[(p, p), (p, p)],
        rhs_dilation=(d, d), dimension_numbers=("NCHW", "OIHW", "NCHW"),
        preferred_element_type=jnp.float32)
    y = y + b[None, :, None, None]
    y = ((y - rmean[None, :, None, None])
         / jnp.sqrt(rvar[None, :, None, None] + eps)
         * gamma[None, :, None, None] + beta[None, :, None, None])
    if act:
        y = jnp.where(y > 0, y, 0.1 * y)
    return y.astype(x_nchw.dtype)


if __name__ == "__main__":
    # Small, forward-consistent shapes: N=2, Cin=4, H=W=16, Cout=8, k=3, p=1.
    N, C_in, H, W = 2, 4, 16, 16
    C_out, K, P = 8, 3, 1

    key = jax.random.PRNGKey(0)
    kx, kw, kb, kg, kbeta, km, kv = jax.random.split(key, 7)

    x = jax.random.normal(kx, (N, C_in, H, W), jnp.float32)

    # Deterministic synthetic parameters (PyTorch shapes).
    fan_in = C_in * K * K
    w = jax.random.uniform(kw, (C_out, C_in, K, K), jnp.float32,
                           -1.0, 1.0) / jnp.sqrt(fan_in)
    b = jax.random.uniform(kb, (C_out,), jnp.float32, -0.1, 0.1)
    gamma = 1.0 + 0.1 * jax.random.normal(kg, (C_out,), jnp.float32)
    beta = 0.1 * jax.random.normal(kbeta, (C_out,), jnp.float32)
    rmean = 0.1 * jax.random.normal(km, (C_out,), jnp.float32)
    rvar = jnp.abs(1.0 + 0.1 * jax.random.normal(kv, (C_out,), jnp.float32))
    params = (w, b, gamma, beta, rmean, rvar)

    fwd = jax.jit(functools.partial(conv_forward, k=K, p=P, s=1, d=1, g=1,
                                    act=True))
    out = jax.block_until_ready(fwd(x, params))

    ref = _reference(x, params, k=K, p=P, s=1, d=1, act=True)
    assert out.shape == (N, C_out, H, W)
    assert jnp.allclose(out, ref, atol=2e-3, rtol=2e-3), "mismatch vs reference"

    print("KERNEL_OK")
</pallas_src>

<mosaic_0001>
module attributes {stable_mosaic.version = 11 : i64} {
  func.func @_gemm_bn_act_single_kernel(%arg0: i32, %arg1: i32, %arg2: memref<256x128xbf16, #tpu.memory_space<vmem>>, %arg3: memref<128x128xbf16, #tpu.memory_space<vmem>>, %arg4: memref<1x128xf32, #tpu.memory_space<vmem>>, %arg5: memref<1x128xf32, #tpu.memory_space<vmem>>, %arg6: memref<256x128xf32, #tpu.memory_space<vmem>>) attributes {dimension_semantics = [#tpu.dimension_semantics<parallel>, #tpu.dimension_semantics<parallel>], iteration_bounds = array<i64: 2, 1>, scalar_prefetch = 0 : i64, scratch_operands = 0 : i64, tpu.core_type = #tpu.core_type<tc>, window_params = [{transform_indices = @transform_0, window_bounds = array<i64: 256, 128>}, {transform_indices = @transform_1, window_bounds = array<i64: 128, 128>}, {transform_indices = @transform_2, window_bounds = array<i64: 1, 128>}, {transform_indices = @transform_3, window_bounds = array<i64: 1, 128>}, {transform_indices = @transform_4, window_bounds = array<i64: 256, 128>}]} {
    %c0 = arith.constant 0 : index
    %c0_0 = arith.constant 0 : index
    %0 = vector.load %arg2[%c0, %c0_0] : memref<256x128xbf16, #tpu.memory_space<vmem>>, vector<256x128xbf16>
    %c0_1 = arith.constant 0 : index
    %c0_2 = arith.constant 0 : index
    %1 = vector.load %arg3[%c0_1, %c0_2] : memref<128x128xbf16, #tpu.memory_space<vmem>>, vector<128x128xbf16>
    %cst = arith.constant dense<0.000000e+00> : vector<256x128xf32>
    %2 = tpu.matmul %0, %1, %cst {dimension_numbers = #tpu.dot_dimension_numbers<[1], [0], [0], [1], [0, 0, 1, 1], [], []>} : vector<256x128xbf16>, vector<128x128xbf16>, vector<256x128xf32> -> vector<256x128xf32>
    %c0_3 = arith.constant 0 : index
    %c0_4 = arith.constant 0 : index
    %3 = vector.load %arg4[%c0_3, %c0_4] : memref<1x128xf32, #tpu.memory_space<vmem>>, vector<1x128xf32>
    %4 = vector.broadcast %3 : vector<1x128xf32> to vector<256x128xf32>
    %5 = arith.mulf %2, %4 : vector<256x128xf32>
    %c0_5 = arith.constant 0 : index
    %c0_6 = arith.constant 0 : index
    %6 = vector.load %arg5[%c0_5, %c0_6] : memref<1x128xf32, #tpu.memory_space<vmem>>, vector<1x128xf32>
    %7 = vector.broadcast %6 : vector<1x128xf32> to vector<256x128xf32>
    %8 = arith.addf %5, %7 : vector<256x128xf32>
    %cst_7 = arith.constant 0.000000e+00 : f32
    %9 = vector.broadcast %cst_7 : f32 to vector<256x128xf32>
    %10 = arith.cmpf ogt, %8, %9 : vector<256x128xf32>
    %cst_8 = arith.constant 1.000000e-01 : f32
    %11 = vector.broadcast %cst_8 : f32 to vector<256x128xf32>
    %12 = arith.mulf %11, %8 : vector<256x128xf32>
    %13 = arith.select %10, %8, %12 : vector<256x128xi1>, vector<256x128xf32>
    %c0_9 = arith.constant 0 : index
    %c0_10 = arith.constant 0 : index
    %14 = vector.load %arg6[%c0_9, %c0_10] : memref<256x128xf32, #tpu.memory_space<vmem>>, vector<256x128xf32>
    tpu.vector_store %arg6[%c0_9, %c0_10], %13 {strides = array<i32>} : memref<256x128xf32, #tpu.memory_space<vmem>>, vector<256x128xf32>,
    return
  }
  func.func @transform_0(%arg0: i32, %arg1: i32) -> (i32, i32) {
    %c0_i32 = arith.constant 0 : i32
    %c0_i32_0 = arith.constant 0 : i32
    return %arg0, %c0_i32 : i32, i32
  }
  func.func @transform_1(%arg0: i32, %arg1: i32) -> (i32, i32) {
    %c0_i32 = arith.constant 0 : i32
    %c0_i32_0 = arith.constant 0 : i32
    return %c0_i32, %arg1 : i32, i32
  }
  func.func @transform_2(%arg0: i32, %arg1: i32) -> (i32, i32) {
    %c0_i32 = arith.constant 0 : i32
    %c0_i32_0 = arith.constant 0 : i32
    return %c0_i32, %arg1 : i32, i32
  }
  func.func @transform_3(%arg0: i32, %arg1: i32) -> (i32, i32) {
    %c0_i32 = arith.constant 0 : i32
    %c0_i32_0 = arith.constant 0 : i32
    return %c0_i32, %arg1 : i32, i32
  }
  func.func @transform_4(%arg0: i32, %arg1: i32) -> (i32, i32) {
    %c0_i32 = arith.constant 0 : i32
    return %arg0, %arg1 : i32, i32
  }
}

</mosaic_0001>

<llo_original>
// kernel: conv_forward.1
$region0: #{conv_forward.1}
  #allocation0 [shape = 'u32[]', space=smem, size = 0x4, offset = 0x4, fixed_abs, tag = 'smem constant byte address 0x4 - core index']
  #allocation1 [shape = 'u32[144,128]{1,0:T(1,128)}', space=vmem, size = 0x12000, scoped, tag = 'internal scratch']
  %s0 = inlined_call_operand.vmem [shape: bf16[512,128], index: 0, kind: input, shape index: {}]
  %s1 = inlined_call_operand.vmem [shape: bf16[128,128], index: 1, kind: input, shape index: {}]
  %s2 = inlined_call_operand.vmem [shape: f32[1,128], index: 2, kind: input, shape index: {}]
  %s3 = inlined_call_operand.vmem [shape: f32[1,128], index: 3, kind: input, shape index: {}]
  %s4 = inlined_call_operand.vmem [shape: f32[512,128], index: 4, kind: output, shape index: {}]
  %s5 = sld [smem:[#allocation0]]
  $region49: #{conv_forward.1} parent=0
    _
  %s7 = ssub.s32 1, %s5
  %s8 = scalar_select 0, %s7, %s5
  loop: start=0, step=1, limit=4
  $region2: #{conv_forward.1} parent=0 // loop_pre_header
    _
  $region3: #{conv_forward.1} parent=0 // loop_header
    %s10 = sphi 0, %s14
    %p11 = scmp.ge.s32.totalorder %s10, 4
    %s17 = sphi 0, %s29
    %s18 = sphi 0, %s25
    %s19 = sphi 0, %s17
    %s20 = sphi 0, %s18
    %s21 = sphi 0, %s19
    %s22 = sphi 0, %s20
    %s32 = sphi 0, %s34
    %s35 = sphi 0, %s32
    %s36 = sphi 0, %s35
    %s52 = sphi 0, %s36
    %s58 = sphi 0, %s60
    %s61 = sphi 0, %s58
    %s62 = sphi 0, %s61
    %s78 = sphi 0, %s62
    %s84 = sphi 0, %s86
    %s87 = sphi 0, %s84
    %s88 = sphi 0, %s87
    %s104 = sphi 0, %s88
    %s110 = sphi 0, %s112
    %s113 = sphi 0, %s110
    %s114 = sphi 0, %s113
    %s130 = sphi 0, %s114
    %s138 = sphi 0, %s140
    %s141 = sphi 0, %s138
    %s142 = sphi 0, %s141
    %s158 = sphi 0, %s142
  $region4: #{conv_forward.1} parent=0 // loop_header_branch
    %13 = sbr.rel (%p11) target = $region8
  $region5: #{conv_forward.1} parent=0 // loop_body
    %s15 = ssub.s32 %s10, 1
    %s16 = ssub.s32 %s10, 2
    %s23 = sadd.s32 1, %s18
    %p24 = scmp.ge.s32.totalorder %s23, 1
    %s25 = scalar_select %p24, 0, %s23
    %s26 = sadd.s32 1, %s17
    %s27 = scalar_select %p24, %s26, %s17
    %p28 = scmp.ge.s32.totalorder %s27, 2
    %s29 = scalar_select %p28, 0, %s27
    %s30 = ssub.s32 %s17, %s29
    %p31 = scmp.eq.s32.totalorder %s30, 0
    %s33 = sadd.s32 %s32, 1
    %s34 = scalar_select %p31, %s32, %s33
    %p37 = pneg %p31
    %p38 = scmp.eq.s32.totalorder %s10, 1
    %p39 = por %p37, %p38
    %p40 = scmp.ne.s32.totalorder %s32, %s35
    %p41 = scmp.eq.s32.totalorder %s10, 0
    %p42 = por %p40, %p41
    %p43 = scmp.ne.s32.totalorder %s32, %s35
    %p44 = scmp.eq.s32.totalorder %s15, 1
    %p45 = por %p43, %p44
    %p46 = scmp.ne.s32.totalorder %s35, %s36
    %p47 = scmp.eq.s32.totalorder %s15, 0
    %p48 = por %p46, %p47
    %p49 = scmp.ne.s32.totalorder %s35, %s36
    %p50 = scmp.eq.s32.totalorder %s16, 1
    %p51 = por %p49, %p50
    %p53 = scmp.ne.s32.totalorder %s36, %s52
    %p54 = scmp.eq.s32.totalorder %s16, 0
    %p55 = por %p53, %p54
    %s56 = ssub.s32 %s18, %s25
    %p57 = scmp.eq.s32.totalorder %s56, 0
    %s59 = sadd.s32 %s58, 1
    %s60 = scalar_select %p57, %s58, %s59
    %p63 = pneg %p57
    %p64 = scmp.eq.s32.totalorder %s10, 1
    %p65 = por %p63, %p64
    %p66 = scmp.ne.s32.totalorder %s58, %s61
    %p67 = scmp.eq.s32.totalorder %s10, 0
    %p68 = por %p66, %p67
    %p69 = scmp.ne.s32.totalorder %s58, %s61
    %p70 = scmp.eq.s32.totalorder %s15, 1
    %p71 = por %p69, %p70
    %p72 = scmp.ne.s32.totalorder %s61, %s62
    %p73 = scmp.eq.s32.totalorder %s15, 0
    %p74 = por %p72, %p73
    %p75 = scmp.ne.s32.totalorder %s61, %s62
    %p76 = scmp.eq.s32.totalorder %s16, 1
    %p77 = por %p75, %p76
    %p79 = scmp.ne.s32.totalorder %s62, %s78
    %p80 = scmp.eq.s32.totalorder %s16, 0
    %p81 = por %p79, %p80
    %s82 = ssub.s32 %s18, %s25
    %p83 = scmp.eq.s32.totalorder %s82, 0
    %s85 = sadd.s32 %s84, 1
    %s86 = scalar_select %p83, %s84, %s85
    %p89 = pneg %p83
    %p90 = scmp.eq.s32.totalorder %s10, 1
    %p91 = por %p89, %p90
    %p92 = scmp.ne.s32.totalorder %s84, %s87
    %p93 = scmp.eq.s32.totalorder %s10, 0
    %p94 = por %p92, %p93
    %p95 = scmp.ne.s32.totalorder %s84, %s87
    %p96 = scmp.eq.s32.totalorder %s15, 1
    %p97 = por %p95, %p96
    %p98 = scmp.ne.s32.totalorder %s87, %s88
    %p99 = scmp.eq.s32.totalorder %s15, 0
    %p100 = por %p98, %p99
    %p101 = scmp.ne.s32.totalorder %s87, %s88
    %p102 = scmp.eq.s32.totalorder %s16, 1
    %p103 = por %p101, %p102
    %p105 = scmp.ne.s32.totalorder %s88, %s104
    %p106 = scmp.eq.s32.totalorder %s16, 0
    %p107 = por %p105, %p106
    %s108 = ssub.s32 %s18, %s25
    %p109 = scmp.eq.s32.totalorder %s108, 0
    %s111 = sadd.s32 %s110, 1
    %s112 = scalar_select %p109, %s110, %s111
    %p115 = pneg %p109
    %p116 = scmp.eq.s32.totalorder %s10, 1
    %p117 = por %p115, %p116
    %p118 = scmp.ne.s32.totalorder %s110, %s113
    %p119 = scmp.eq.s32.totalorder %s10, 0
    %p120 = por %p118, %p119
    %p121 = scmp.ne.s32.totalorder %s110, %s113
    %p122 = scmp.eq.s32.totalorder %s15, 1
    %p123 = por %p121, %p122
    %p124 = scmp.ne.s32.totalorder %s113, %s114
    %p125 = scmp.eq.s32.totalorder %s15, 0
    %p126 = por %p124, %p125
    %p127 = scmp.ne.s32.totalorder %s113, %s114
    %p128 = scmp.eq.s32.totalorder %s16, 1
    %p129 = por %p127, %p128
    %p131 = scmp.ne.s32.totalorder %s114, %s130
    %p132 = scmp.eq.s32.totalorder %s16, 0
    %p133 = por %p131, %p132
    %s134 = ssub.s32 %s17, %s29
    %s135 = ssub.s32 %s18, %s25
    %s136 = sor.u32 %s134, %s135
    %p137 = scmp.eq.s32.totalorder %s136, 0
    %s139 = sadd.s32 %s138, 1
    %s140 = scalar_select %p137, %s138, %s139
    %p143 = pneg %p137
    %p144 = scmp.eq.s32.totalorder %s10, 1
    %p145 = por %p143, %p144
    %p146 = scmp.ne.s32.totalorder %s138, %s141
    %p147 = scmp.eq.s32.totalorder %s10, 0
    %p148 = por %p146, %p147
    %p149 = scmp.ne.s32.totalorder %s138, %s141
    %p150 = scmp.eq.s32.totalorder %s15, 1
    %p151 = por %p149, %p150
    %p152 = scmp.ne.s32.totalorder %s141, %s142
    %p153 = scmp.eq.s32.totalorder %s15, 0
    %p154 = por %p152, %p153
    %p155 = scmp.ne.s32.totalorder %s141, %s142
    %p156 = scmp.eq.s32.totalorder %s16, 1
    %p157 = por %p155, %p156
    %p159 = scmp.ne.s32.totalorder %s142, %s158
    %p160 = scmp.eq.s32.totalorder %s16, 0
    %p161 = por %p159, %p160
    %p162 = scmp.le.s32.totalorder 1, %s10
    %p163 = scmp.lt.s32.totalorder %s10, 3
    %p164 = pnand %p162, %p163
    %p165 = pneg %p164
    // Predicated region
    $region9: #{conv_forward.1} parent=5 // pred_check
      _
    $region10: #{conv_forward.1} parent=5 // pred_check_branch
      %167 = sbr.rel (%p164) target = $region12
    $region11: #{conv_forward.1} parent=5 // pred_region
      %s168 = ssub.s32 %s10, 1
      // Predicated region
      $region13: #{conv_forward.1} parent=11 // pred_check
        %p169 = pneg %p74
      $region14: #{conv_forward.1} parent=11 // pred_check_branch
        %171 = sbr.rel (%p169) target = $region16
      $region15: #{conv_forward.1} parent=11 // pred_region
        %p172 = scmp.lt.s32.totalorder %s20, 0
        %s173 = scalar_select %p172, %s20, 0
        %s174 = smul.addr %s173, 4
        %s175 = scalar_lea.vmem %s1, %s174
      $region16: #{conv_forward.1} parent=11 // pred_fallthru
        _
      // Predicated region
      $region17: #{conv_forward.1} parent=11 // pred_check
        %p176 = pneg %p100
      $region18: #{conv_forward.1} parent=11 // pred_check_branch
        %178 = sbr.rel (%p176) target = $region20
      $region19: #{conv_forward.1} parent=11 // pred_region
        %p179 = scmp.lt.s32.totalorder %s20, 0
        %s180 = scalar_select %p179, %s20, 0
        %s181 = scalar_lea.vmem %s2, %s180
      $region20: #{conv_forward.1} parent=11 // pred_fallthru
        _
      // Predicated region
      $region21: #{conv_forward.1} parent=11 // pred_check
        %p182 = pneg %p126
      $region22: #{conv_forward.1} parent=11 // pred_check_branch
        %184 = sbr.rel (%p182) target = $region24
      $region23: #{conv_forward.1} parent=11 // pred_region
        %p185 = scmp.lt.s32.totalorder %s20, 0
        %s186 = scalar_select %p185, %s20, 0
        %s187 = scalar_lea.vmem %s3, %s186
      $region24: #{conv_forward.1} parent=11 // pred_fallthru
        _
    $region12: #{conv_forward.1} parent=5 // pred_fallthru
      _
    %p188 = scmp.lt.s32.totalorder %s10, 2
    // Predicated region
    $region25: #{conv_forward.1} parent=5 // pred_check
      %p189 = pneg %p188
    $region26: #{conv_forward.1} parent=5 // pred_check_branch
      %191 = sbr.rel (%p189) target = $region28
    $region27: #{conv_forward.1} parent=5 // pred_region
      // Predicated region
      $region29: #{conv_forward.1} parent=27 // pred_check
        %p192 = pneg %p42
      $region30: #{conv_forward.1} parent=27 // pred_check_branch
        %194 = sbr.rel (%p192) target = $region32
      $region31: #{conv_forward.1} parent=27 // pred_region
        %s195 = smul.u32 32, %s17
        %p196 = scmp.lt.s32.totalorder %s195, 63
        %s197 = scalar_select %p196, %s195, 63
        %s198 = smul.addr %s197, 4
        %s199 = scalar_lea.vmem %s0, %s198
        %s200 = smul.u32 32, %s17
      $region32: #{conv_forward.1} parent=27 // pred_fallthru
        _
    $region28: #{conv_forward.1} parent=5 // pred_fallthru
      _
    %p201 = scmp.le.s32.totalorder 1, %s10
    %p202 = scmp.lt.s32.totalorder %s10, 3
    %p203 = pnand %p201, %p202
    %p204 = pneg %p203
    // Predicated region
    $region33: #{conv_forward.1} parent=5 // pred_check
      _
    $region34: #{conv_forward.1} parent=5 // pred_check_branch
      %206 = sbr.rel (%p203) target = $region36
    $region35: #{conv_forward.1} parent=5 // pred_region
      %s207 = ssub.s32 %s10, 1
      %s208 = smul.u32 32, %s19
      %p209 = scmp.lt.s32.totalorder %s208, 63
      %s210 = scalar_select %p209, %s208, 63
      %s211 = smul.addr %s210, 4
      %s212 = scalar_lea.vmem %s0, %s211
      %p213 = pneg %p48
      %p214 = pneg %p45
      %p215 = scmp.lt.s32.totalorder %s20, 0
      %s216 = scalar_select %p215, %s20, 0
      %s217 = smul.addr %s216, 4
      %s218 = scalar_lea.vmem %s1, %s217
      %p219 = pneg %p74
      %p220 = pneg %p71
      %p221 = scmp.lt.s32.totalorder %s20, 0
      %s222 = scalar_select %p221, %s20, 0
      %s223 = scalar_lea.vmem %s2, %s222
      %p224 = pneg %p100
      %p225 = pneg %p97
      %p226 = scmp.lt.s32.totalorder %s20, 0
      %s227 = scalar_select %p226, %s20, 0
      %s228 = scalar_lea.vmem %s3, %s227
      %p229 = pneg %p126
      %p230 = pneg %p123
      %p231 = pneg %p154
      %p232 = pneg %p151
      %s233 = smul.u32 32, %s19
      %p234 = scmp.lt.s32.totalorder %s233, 63
      %s235 = scalar_select %p234, %s233, 63
      %p236 = scmp.lt.s32.totalorder %s20, 0
      %s237 = scalar_select %p236, %s20, 0
      %s238 = sadd.s32 %s237, %s235
      %s239 = smul.addr %s238, 8
      %s240 = scalar_lea.vmem %s4, %s239
      %s241 = smul.u32 32, %s19
      %p242 = scmp.lt.s32.totalorder %s241, 63
      %s243 = scalar_select %p242, %s241, 63
      %s244 = smul.addr %s243, 4
      %s245 = scalar_lea.vmem %s0, %s244
      %s246 = smul.u32 32, %s19
      %p247 = scmp.lt.s32.totalorder %s20, 0
      %s248 = scalar_select %p247, %s20, 0
      %s249 = smul.addr %s248, 4
      %s250 = scalar_lea.vmem %s1, %s249
      %p251 = scmp.lt.s32.totalorder %s20, 0
      %s252 = scalar_select %p251, %s20, 0
      %s253 = scalar_lea.vmem %s2, %s252
      %p254 = scmp.lt.s32.totalorder %s20, 0
      %s255 = scalar_select %p254, %s20, 0
      %s256 = scalar_lea.vmem %s3, %s255
      %s257 = smul.u32 32, %s19
      %p258 = scmp.lt.s32.totalorder %s257, 63
      %s259 = scalar_select %p258, %s257, 63
      %p260 = scmp.lt.s32.totalorder %s20, 0
      %s261 = scalar_select %p260, %s20, 0
      %s262 = sadd.s32 %s261, %s259
      %s263 = smul.addr %s262, 8
      %s264 = scalar_lea.vmem %s4, %s263
      %s265 = smul.u32 32, %s19
      %v267 = vld [vmem:[%s245] sm:$0xf]
      %v268 = vld [vmem:[%s245 + $0x4] sm:$0xf]
      %v269 = vld [vmem:[%s245 + $0x8] sm:$0xf]
      %v270 = vld [vmem:[%s245 + $0xc] sm:$0xf]
      %v271 = vld [vmem:[%s245 + $0x10] sm:$0xf]
      %v272 = vld [vmem:[%s245 + $0x14] sm:$0xf]
      %v273 = vld [vmem:[%s245 + $0x18] sm:$0xf]
      %v274 = vld [vmem:[%s245 + $0x1c] sm:$0xf]
      %v275 = vld [vmem:[%s245 + $0x20] sm:$0xf]
      %v276 = vld [vmem:[%s245 + $0x24] sm:$0xf]
      %v277 = vld [vmem:[%s245 + $0x28] sm:$0xf]
      %v278 = vld [vmem:[%s245 + $0x2c] sm:$0xf]
      %v279 = vld [vmem:[%s245 + $0x30] sm:$0xf]
      %v280 = vld [vmem:[%s245 + $0x34] sm:$0xf]
      %v281 = vld [vmem:[%s245 + $0x38] sm:$0xf]
      %v282 = vld [vmem:[%s245 + $0x3c] sm:$0xf]
      %v283 = vld [vmem:[%s245 + $0x40] sm:$0xf]
      %v284 = vld [vmem:[%s245 + $0x44] sm:$0xf]
      %v285 = vld [vmem:[%s245 + $0x48] sm:$0xf]
      %v286 = vld [vmem:[%s245 + $0x4c] sm:$0xf]
      %v287 = vld [vmem:[%s245 + $0x50] sm:$0xf]
      %v288 = vld [vmem:[%s245 + $0x54] sm:$0xf]
      %v289 = vld [vmem:[%s245 + $0x58] sm:$0xf]
      %v290 = vld [vmem:[%s245 + $0x5c] sm:$0xf]
      %v291 = vld [vmem:[%s245 + $0x60] sm:$0xf]
      %v292 = vld [vmem:[%s245 + $0x64] sm:$0xf]
      %v293 = vld [vmem:[%s245 + $0x68] sm:$0xf]
      %v294 = vld [vmem:[%s245 + $0x6c] sm:$0xf]
      %v295 = vld [vmem:[%s245 + $0x70] sm:$0xf]
      %v296 = vld [vmem:[%s245 + $0x74] sm:$0xf]
      %v297 = vld [vmem:[%s245 + $0x78] sm:$0xf]
      %v298 = vld [vmem:[%s245 + $0x7c] sm:$0xf]
      %v299 = vld [vmem:[%s250] sm:$0xf]
      %v300 = vld [vmem:[%s250 + $0x4] sm:$0xf]
      %v301 = vld [vmem:[%s250 + $0x8] sm:$0xf]
      %v302 = vld [vmem:[%s250 + $0xc] sm:$0xf]
      %v303 = vld [vmem:[%s250 + $0x10] sm:$0xf]
      %v304 = vld [vmem:[%s250 + $0x14] sm:$0xf]
      %v305 = vld [vmem:[%s250 + $0x18] sm:$0xf]
      %v306 = vld [vmem:[%s250 + $0x1c] sm:$0xf]
      %v307 = vld [vmem:[%s250 + $0x20] sm:$0xf]
      %v308 = vld [vmem:[%s250 + $0x24] sm:$0xf]
      %v309 = vld [vmem:[%s250 + $0x28] sm:$0xf]
      %v310 = vld [vmem:[%s250 + $0x2c] sm:$0xf]
      %v311 = vld [vmem:[%s250 + $0x30] sm:$0xf]
      %v312 = vld [vmem:[%s250 + $0x34] sm:$0xf]
      %v313 = vld [vmem:[%s250 + $0x38] sm:$0xf]
      %v314 = vld [vmem:[%s250 + $0x3c] sm:$0xf]
      %v347 = vunpack.c.l.b16 %v267
      %v348 = vunpack.c.l.b16 %v268
      %v349 = vunpack.c.l.b16 %v269
      %v350 = vunpack.c.l.b16 %v270
      %v351 = vunpack.c.l.b16 %v271
      %v352 = vunpack.c.l.b16 %v272
      %v353 = vunpack.c.l.b16 %v273
      %v354 = vunpack.c.l.b16 %v274
      %v355 = vunpack.c.l.b16 %v275
      %v356 = vunpack.c.l.b16 %v276
      %v357 = vunpack.c.l.b16 %v277
      %v358 = vunpack.c.l.b16 %v278
      %v359 = vunpack.c.l.b16 %v279
      %v360 = vunpack.c.l.b16 %v280
      %v361 = vunpack.c.l.b16 %v281
      %v362 = vunpack.c.l.b16 %v282
      %v363 = vunpack.c.l.b16 %v283
      %v364 = vunpack.c.l.b16 %v284
      %v365 = vunpack.c.l.b16 %v285
      %v366 = vunpack.c.l.b16 %v286
      %v367 = vunpack.c.l.b16 %v287
      %v368 = vunpack.c.l.b16 %v288
      %v369 = vunpack.c.l.b16 %v289
      %v370 = vunpack.c.l.b16 %v290
      %v371 = vunpack.c.l.b16 %v291
      %v372 = vunpack.c.l.b16 %v292
      %v373 = vunpack.c.l.b16 %v293
      %v374 = vunpack.c.l.b16 %v294
      %v375 = vunpack.c.l.b16 %v295
      %v376 = vunpack.c.l.b16 %v296
      %v377 = vunpack.c.l.b16 %v297
      %v378 = vunpack.c.l.b16 %v298
      %v379 = vpack.c.b16 %v348, %v347
      %v380 = vpack.c.b16 %v350, %v349
      %v381 = vpack.c.b16 %v352, %v351
      %v382 = vpack.c.b16 %v354, %v353
      %v383 = vpack.c.b16 %v356, %v355
      %v384 = vpack.c.b16 %v358, %v357
      %v385 = vpack.c.b16 %v360, %v359
      %v386 = vpack.c.b16 %v362, %v361
      %v387 = vpack.c.b16 %v364, %v363
      %v388 = vpack.c.b16 %v366, %v365
      %v389 = vpack.c.b16 %v368, %v367
      %v390 = vpack.c.b16 %v370, %v369
      %v391 = vpack.c.b16 %v372, %v371
      %v392 = vpack.c.b16 %v374, %v373
      %v393 = vpack.c.b16 %v376, %v375
      %v394 = vpack.c.b16 %v378, %v377
      %v427 = vunpack.c.l.b16 %v299
      %v428 = vunpack.c.l.b16 %v300
      %v429 = vunpack.c.l.b16 %v301
      %v430 = vunpack.c.l.b16 %v302
      %v431 = vunpack.c.l.b16 %v303
      %v432 = vunpack.c.l.b16 %v304
      %v433 = vunpack.c.l.b16 %v305
      %v434 = vunpack.c.l.b16 %v306
      %v435 = vunpack.c.l.b16 %v307
      %v436 = vunpack.c.l.b16 %v308
      %v437 = vunpack.c.l.b16 %v309
      %v438 = vunpack.c.l.b16 %v310
      %v439 = vunpack.c.l.b16 %v311
      %v440 = vunpack.c.l.b16 %v312
      %v441 = vunpack.c.l.b16 %v313
      %v442 = vunpack.c.l.b16 %v314
      %v443 = vpack.c.b16 %v428, %v427
      %v444 = vpack.c.b16 %v430, %v429
      %v445 = vpack.c.b16 %v432, %v431
      %v446 = vpack.c.b16 %v434, %v433
      %v447 = vpack.c.b16 %v436, %v435
      %v448 = vpack.c.b16 %v438, %v437
      %v449 = vpack.c.b16 %v440, %v439
      %v450 = vpack.c.b16 %v442, %v441
      %459 = vmatprep.subr.bf16.mxu0 0
      %460 = vmatpush1.bf16.msra.mxu0 %v443
      %461 = vmatprep.subr.bf16.mxu0 0
      %462 = vmatpush1.bf16.msra.mxu0 %v444
      %463 = vmatprep.subr.bf16.mxu0 0
      %464 = vmatpush1.bf16.msra.mxu0 %v445
      %465 = vmatprep.subr.bf16.mxu0 0
      %466 = vmatpush1.bf16.msra.mxu0 %v446
      %467 = vmatprep.subr.bf16.mxu0 0
      %468 = vmatpush1.bf16.msra.mxu0 %v447
      %469 = vmatprep.subr.bf16.mxu0 0
      %470 = vmatpush1.bf16.msra.mxu0 %v448
      %471 = vmatprep.subr.bf16.mxu0 0
      %472 = vmatpush1.bf16.msra.mxu0 %v449
      %473 = vmatprep.subr.bf16.mxu0 0
      %474 = vmatpush1.bf16.msra.mxu0 %v450
      %475 = vmatprep.subr.bf16.mxu0 0
      %476 = vmatpush1.bf16.msra.mxu0 0
      %477 = vmatprep.subr.bf16.mxu0 0
      %478 = vmatpush1.bf16.msra.mxu0 0
      %479 = vmatprep.subr.bf16.mxu0 0
      %480 = vmatpush1.bf16.msra.mxu0 0
      %481 = vmatprep.subr.bf16.mxu0 0
      %482 = vmatpush1.bf16.msra.mxu0 0
      %483 = vmatprep.subr.bf16.mxu0 0
      %484 = vmatpush1.bf16.msra.mxu0 0
      %485 = vmatprep.subr.bf16.mxu0 0
      %486 = vmatpush1.bf16.msra.mxu0 0
      %487 = vmatprep.subr.bf16.mxu0 0
      %488 = vmatpush1.bf16.msra.mxu0 0
      %489 = vmatprep.subr.bf16.mxu0 0
      %490 = vmatpush1.bf16.msra.mxu0 0
      %491 = vmatprep.mubr.bf16.mxu0 0
      %492 = vmatmul.mubr.bf16.gmra.mrb[0].mxu0 %v379
      %v493 = vpop.f32.mrb[0].mxu0
      %v494 = vadd.f32 0.0, %v493
      %v495 = vpop.f32.mrb[0].mxu0
      %v496 = vpop.f32.mrb[0].mxu0
      %v497 = vadd.f32 0.0, %v496
      %v498 = vpop.f32.mrb[0].mxu0
      %499 = vmatprep.mubr.bf16.mxu0 0
      %500 = vmatmul.mubr.bf16.gmra.mrb[0].mxu0 %v380
      %v501 = vpop.f32.mrb[0].mxu0
      %v502 = vadd.f32 0.0, %v501
      %v503 = vpop.f32.mrb[0].mxu0
      %v504 = vpop.f32.mrb[0].mxu0
      %v505 = vadd.f32 0.0, %v504
      %v506 = vpop.f32.mrb[0].mxu0
      %507 = vmatprep.mubr.bf16.mxu0 0
      %508 = vmatmul.mubr.bf16.gmra.mrb[0].mxu0 %v381
      %v509 = vpop.f32.mrb[0].mxu0
      %v510 = vadd.f32 0.0, %v509
      %v511 = vpop.f32.mrb[0].mxu0
      %v512 = vpop.f32.mrb[0].mxu0
      %v513 = vadd.f32 0.0, %v512
      %v514 = vpop.f32.mrb[0].mxu0
      %515 = vmatprep.mubr.bf16.mxu0 0
      %516 = vmatmul.mubr.bf16.gmra.mrb[0].mxu0 %v382
      %v517 = vpop.f32.mrb[0].mxu0
      %v518 = vadd.f32 0.0, %v517
      %v519 = vpop.f32.mrb[0].mxu0
      %v520 = vpop.f32.mrb[0].mxu0
      %v521 = vadd.f32 0.0, %v520
      %v522 = vpop.f32.mrb[0].mxu0
      %523 = vmatprep.mubr.bf16.mxu0 0
      %524 = vmatmul.mubr.bf16.gmra.mrb[0].mxu0 %v383
      %v525 = vpop.f32.mrb[0].mxu0
      %v526 = vadd.f32 0.0, %v525
      %v527 = vpop.f32.mrb[0].mxu0
      %v528 = vpop.f32.mrb[0].mxu0
      %v529 = vadd.f32 0.0, %v528
      %v530 = vpop.f32.mrb[0].mxu0
      %531 = vmatprep.mubr.bf16.mxu0 0
      %532 = vmatmul.mubr.bf16.gmra.mrb[0].mxu0 %v384
      %v533 = vpop.f32.mrb[0].mxu0
      %v534 = vadd.f32 0.0, %v533
      %v535 = vpop.f32.mrb[0].mxu0
      %v536 = vpop.f32.mrb[0].mxu0
      %v537 = vadd.f32 0.0, %v536
      %v538 = vpop.f32.mrb[0].mxu0
      %539 = vmatprep.mubr.bf16.mxu0 0
      %540 = vmatmul.mubr.bf16.gmra.mrb[0].mxu0 %v385
      %v541 = vpop.f32.mrb[0].mxu0
      %v542 = vadd.f32 0.0, %v541
      %v543 = vpop.f32.mrb[0].mxu0
      %v544 = vpop.f32.mrb[0].mxu0
      %v545 = vadd.f32 0.0, %v544
      %v546 = vpop.f32.mrb[0].mxu0
      %547 = vmatprep.mubr.bf16.mxu0 0
      %548 = vmatmul.mubr.bf16.gmra.mrb[0].mxu0 %v386
      %v549 = vpop.f32.mrb[0].mxu0
      %v550 = vadd.f32 0.0, %v549
      %v551 = vpop.f32.mrb[0].mxu0
      %v552 = vpop.f32.mrb[0].mxu0
      %v553 = vadd.f32 0.0, %v552
      %v554 = vpop.f32.mrb[0].mxu0
      %555 = vmatprep.mubr.bf16.mxu0 0
      %556 = vmatmul.mubr.bf16.gmra.mrb[0].mxu0 %v387
      %v557 = vpop.f32.mrb[0].mxu0
      %v558 = vadd.f32 0.0, %v557
      %v559 = vpop.f32.mrb[0].mxu0
      %v560 = vpop.f32.mrb[0].mxu0
      %v561 = vadd.f32 0.0, %v560
      %v562 = vpop.f32.mrb[0].mxu0
      %563 = vmatprep.mubr.bf16.mxu0 0
      %564 = vmatmul.mubr.bf16.gmra.mrb[0].mxu0 %v388
      %v565 = vpop.f32.mrb[0].mxu0
      %v566 = vadd.f32 0.0, %v565
      %v567 = vpop.f32.mrb[0].mxu0
      %v568 = vpop.f32.mrb[0].mxu0
      %v569 = vadd.f32 0.0, %v568
      %v570 = vpop.f32.mrb[0].mxu0
      %571 = vmatprep.mubr.bf16.mxu0 0
      %572 = vmatmul.mubr.bf16.gmra.mrb[0].mxu0 %v389
      %v573 = vpop.f32.mrb[0].mxu0
      %v574 = vadd.f32 0.0, %v573
      %v575 = vpop.f32.mrb[0].mxu0
      %v576 = vpop.f32.mrb[0].mxu0
      %v577 = vadd.f32 0.0, %v576
      %v578 = vpop.f32.mrb[0].mxu0
      %579 = vmatprep.mubr.bf16.mxu0 0
      %580 = vmatmul.mubr.bf16.gmra.mrb[0].mxu0 %v390
      %v581 = vpop.f32.mrb[0].mxu0
      %v582 = vadd.f32 0.0, %v581
      %v583 = vpop.f32.mrb[0].mxu0
      %v584 = vpop.f32.mrb[0].mxu0
      %v585 = vadd.f32 0.0, %v584
      %v586 = vpop.f32.mrb[0].mxu0
      %587 = vmatprep.mubr.bf16.mxu0 0
      %588 = vmatmul.mubr.bf16.gmra.mrb[0].mxu0 %v391
      %v589 = vpop.f32.mrb[0].mxu0
      %v590 = vadd.f32 0.0, %v589
      %v591 = vpop.f32.mrb[0].mxu0
      %v592 = vpop.f32.mrb[0].mxu0
      %v593 = vadd.f32 0.0, %v592
      %v594 = vpop.f32.mrb[0].mxu0
      %595 = vmatprep.mubr.bf16.mxu0 0
      %596 = vmatmul.mubr.bf16.gmra.mrb[0].mxu0 %v392
      %v597 = vpop.f32.mrb[0].mxu0
      %v598 = vadd.f32 0.0, %v597
      %v599 = vpop.f32.mrb[0].mxu0
      %v600 = vpop.f32.mrb[0].mxu0
      %v601 = vadd.f32 0.0, %v600
      %v602 = vpop.f32.mrb[0].mxu0
      %603 = vmatprep.mubr.bf16.mxu0 0
      %604 = vmatmul.mubr.bf16.gmra.mrb[0].mxu0 %v393
      %v605 = vpop.f32.mrb[0].mxu0
      %v606 = vadd.f32 0.0, %v605
      %v607 = vpop.f32.mrb[0].mxu0
      %v608 = vpop.f32.mrb[0].mxu0
      %v609 = vadd.f32 0.0, %v608
      %v610 = vpop.f32.mrb[0].mxu0
      %611 = vmatprep.mubr.bf16.mxu0 0
      %612 = vmatmul.mubr.bf16.gmra.mrb[0].mxu0 %v394
      %v613 = vpop.f32.mrb[0].mxu0
      %v614 = vadd.f32 0.0, %v613
      %v615 = vpop.f32.mrb[0].mxu0
      %v616 = vpop.f32.mrb[0].mxu0
      %v617 = vadd.f32 0.0, %v616
      %v618 = vpop.f32.mrb[0].mxu0
      %619 = vdwg.mxu0
      %v620 = vld [vmem:[%s253] sm:$0x1]
      %v622 = vlaneseq
      %v623 = vshrl.u32 %v622, 7
      %v624 = vsub.s32 0, %v623
      %v625 = vrot.slane %v620, %v624
      %v627 = vmul.f32 %v494, %v625
      %v628 = vmul.f32 %v497, %v625
      %v629 = vmul.f32 %v502, %v625
      %v630 = vmul.f32 %v505, %v625
      %v631 = vmul.f32 %v510, %v625
      %v632 = vmul.f32 %v513, %v625
      %v633 = vmul.f32 %v518, %v625
      %v634 = vmul.f32 %v521, %v625
      %v635 = vmul.f32 %v526, %v625
      %v636 = vmul.f32 %v529, %v625
      %v637 = vmul.f32 %v534, %v625
      %v638 = vmul.f32 %v537, %v625
      %v639 = vmul.f32 %v542, %v625
      %v640 = vmul.f32 %v545, %v625
      %v641 = vmul.f32 %v550, %v625
      %v642 = vmul.f32 %v553, %v625
      %v643 = vmul.f32 %v558, %v625
      %v644 = vmul.f32 %v561, %v625
      %v645 = vmul.f32 %v566, %v625
      %v646 = vmul.f32 %v569, %v625
      %v647 = vmul.f32 %v574, %v625
      %v648 = vmul.f32 %v577, %v625
      %v649 = vmul.f32 %v582, %v625
      %v650 = vmul.f32 %v585, %v625
      %v651 = vmul.f32 %v590, %v625
      %v652 = vmul.f32 %v593, %v625
      %v653 = vmul.f32 %v598, %v625
      %v654 = vmul.f32 %v601, %v625
      %v655 = vmul.f32 %v606, %v625
      %v656 = vmul.f32 %v609, %v625
      %v657 = vmul.f32 %v614, %v625
      %v658 = vmul.f32 %v617, %v625
      %v659 = vld [vmem:[%s256] sm:$0x1]
      %v661 = vlaneseq
      %v662 = vshrl.u32 %v661, 7
      %v663 = vsub.s32 0, %v662
      %v664 = vrot.slane %v659, %v663
      %v666 = vadd.f32 %v627, %v664
      %v667 = vadd.f32 %v628, %v664
      %v668 = vadd.f32 %v629, %v664
      %v669 = vadd.f32 %v630, %v664
      %v670 = vadd.f32 %v631, %v664
      %v671 = vadd.f32 %v632, %v664
      %v672 = vadd.f32 %v633, %v664
      %v673 = vadd.f32 %v634, %v664
      %v674 = vadd.f32 %v635, %v664
      %v675 = vadd.f32 %v636, %v664
      %v676 = vadd.f32 %v637, %v664
      %v677 = vadd.f32 %v638, %v664
      %v678 = vadd.f32 %v639, %v664
      %v679 = vadd.f32 %v640, %v664
      %v680 = vadd.f32 %v641, %v664
      %v681 = vadd.f32 %v642, %v664
      %v682 = vadd.f32 %v643, %v664
      %v683 = vadd.f32 %v644, %v664
      %v684 = vadd.f32 %v645, %v664
      %v685 = vadd.f32 %v646, %v664
      %v686 = vadd.f32 %v647, %v664
      %v687 = vadd.f32 %v648, %v664
      %v688 = vadd.f32 %v649, %v664
      %v689 = vadd.f32 %v650, %v664
      %v690 = vadd.f32 %v651, %v664
      %v691 = vadd.f32 %v652, %v664
      %v692 = vadd.f32 %v653, %v664
      %v693 = vadd.f32 %v654, %v664
      %v694 = vadd.f32 %v655, %v664
      %v695 = vadd.f32 %v656, %v664
      %v696 = vadd.f32 %v657, %v664
      %v697 = vadd.f32 %v658, %v664
      %vm698 = vcmp.gt.f32.partialorder %v666, 0.0
      %vm699 = vcmp.gt.f32.partialorder %v667, 0.0
      %vm700 = vcmp.gt.f32.partialorder %v668, 0.0
      %vm701 = vcmp.gt.f32.partialorder %v669, 0.0
      %vm702 = vcmp.gt.f32.partialorder %v670, 0.0
      %vm703 = vcmp.gt.f32.partialorder %v671, 0.0
      %vm704 = vcmp.gt.f32.partialorder %v672, 0.0
      %vm705 = vcmp.gt.f32.partialorder %v673, 0.0
      %vm706 = vcmp.gt.f32.partialorder %v674, 0.0
      %vm707 = vcmp.gt.f32.partialorder %v675, 0.0
      %vm708 = vcmp.gt.f32.partialorder %v676, 0.0
      %vm709 = vcmp.gt.f32.partialorder %v677, 0.0
      %vm710 = vcmp.gt.f32.partialorder %v678, 0.0
      %vm711 = vcmp.gt.f32.partialorder %v679, 0.0
      %vm712 = vcmp.gt.f32.partialorder %v680, 0.0
      %vm713 = vcmp.gt.f32.partialorder %v681, 0.0
      %vm714 = vcmp.gt.f32.partialorder %v682, 0.0
      %vm715 = vcmp.gt.f32.partialorder %v683, 0.0
      %vm716 = vcmp.gt.f32.partialorder %v684, 0.0
      %vm717 = vcmp.gt.f32.partialorder %v685, 0.0
      %vm718 = vcmp.gt.f32.partialorder %v686, 0.0
      %vm719 = vcmp.gt.f32.partialorder %v687, 0.0
      %vm720 = vcmp.gt.f32.partialorder %v688, 0.0
      %vm721 = vcmp.gt.f32.partialorder %v689, 0.0
      %vm722 = vcmp.gt.f32.partialorder %v690, 0.0
      %vm723 = vcmp.gt.f32.partialorder %v691, 0.0
      %vm724 = vcmp.gt.f32.partialorder %v692, 0.0
      %vm725 = vcmp.gt.f32.partialorder %v693, 0.0
      %vm726 = vcmp.gt.f32.partialorder %v694, 0.0
      %vm727 = vcmp.gt.f32.partialorder %v695, 0.0
      %vm728 = vcmp.gt.f32.partialorder %v696, 0.0
      %vm729 = vcmp.gt.f32.partialorder %v697, 0.0
      %v730 = vmul.f32 %v666, 0.1
      %v731 = vmul.f32 %v667, 0.1
      %v732 = vmul.f32 %v668, 0.1
      %v733 = vmul.f32 %v669, 0.1
      %v734 = vmul.f32 %v670, 0.1
      %v735 = vmul.f32 %v671, 0.1
      %v736 = vmul.f32 %v672, 0.1
      %v737 = vmul.f32 %v673, 0.1
      %v738 = vmul.f32 %v674, 0.1
      %v739 = vmul.f32 %v675, 0.1
      %v740 = vmul.f32 %v676, 0.1
      %v741 = vmul.f32 %v677, 0.1
      %v742 = vmul.f32 %v678, 0.1
      %v743 = vmul.f32 %v679, 0.1
      %v744 = vmul.f32 %v680, 0.1
      %v745 = vmul.f32 %v681, 0.1
      %v746 = vmul.f32 %v682, 0.1
      %v747 = vmul.f32 %v683, 0.1
      %v748 = vmul.f32 %v684, 0.1
      %v749 = vmul.f32 %v685, 0.1
      %v750 = vmul.f32 %v686, 0.1
      %v751 = vmul.f32 %v687, 0.1
      %v752 = vmul.f32 %v688, 0.1
      %v753 = vmul.f32 %v689, 0.1
      %v754 = vmul.f32 %v690, 0.1
      %v755 = vmul.f32 %v691, 0.1
      %v756 = vmul.f32 %v692, 0.1
      %v757 = vmul.f32 %v693, 0.1
      %v758 = vmul.f32 %v694, 0.1
      %v759 = vmul.f32 %v695, 0.1
      %v760 = vmul.f32 %v696, 0.1
      %v761 = vmul.f32 %v697, 0.1
      %v762 = vsel %vm698, %v666, %v730
      %v763 = vsel %vm699, %v667, %v731
      %v764 = vsel %vm700, %v668, %v732
      %v765 = vsel %vm701, %v669, %v733
      %v766 = vsel %vm702, %v670, %v734
      %v767 = vsel %vm703, %v671, %v735
      %v768 = vsel %vm704, %v672, %v736
      %v769 = vsel %vm705, %v673, %v737
      %v770 = vsel %vm706, %v674, %v738
      %v771 = vsel %vm707, %v675, %v739
      %v772 = vsel %vm708, %v676, %v740
      %v773 = vsel %vm709, %v677, %v741
      %v774 = vsel %vm710, %v678, %v742
      %v775 = vsel %vm711, %v679, %v743
      %v776 = vsel %vm712, %v680, %v744
      %v777 = vsel %vm713, %v681, %v745
      %v778 = vsel %vm714, %v682, %v746
      %v779 = vsel %vm715, %v683, %v747
      %v780 = vsel %vm716, %v684, %v748
      %v781 = vsel %vm717, %v685, %v749
      %v782 = vsel %vm718, %v686, %v750
      %v783 = vsel %vm719, %v687, %v751
      %v784 = vsel %vm720, %v688, %v752
      %v785 = vsel %vm721, %v689, %v753
      %v786 = vsel %vm722, %v690, %v754
      %v787 = vsel %vm723, %v691, %v755
      %v788 = vsel %vm724, %v692, %v756
      %v789 = vsel %vm725, %v693, %v757
      %v790 = vsel %vm726, %v694, %v758
      %v791 = vsel %vm727, %v695, %v759
      %v792 = vsel %vm728, %v696, %v760
      %v793 = vsel %vm729, %v697, %v761
      %794 = vst [vmem:[%s264] sm:$0xff] %v762
      %795 = vst [vmem:[%s264 + $0x8] sm:$0xff] %v763
      %796 = vst [vmem:[%s264 + $0x10] sm:$0xff] %v764
      %797 = vst [vmem:[%s264 + $0x18] sm:$0xff] %v765
      %798 = vst [vmem:[%s264 + $0x20] sm:$0xff] %v766
      %799 = vst [vmem:[%s264 + $0x28] sm:$0xff] %v767
      %800 = vst [vmem:[%s264 + $0x30] sm:$0xff] %v768
      %801 = vst [vmem:[%s264 + $0x38] sm:$0xff] %v769
      %802 = vst [vmem:[%s264 + $0x40] sm:$0xff] %v770
      %803 = vst [vmem:[%s264 + $0x48] sm:$0xff] %v771
      %804 = vst [vmem:[%s264 + $0x50] sm:$0xff] %v772
      %805 = vst [vmem:[%s264 + $0x58] sm:$0xff] %v773
      %806 = vst [vmem:[%s264 + $0x60] sm:$0xff] %v774
      %807 = vst [vmem:[%s264 + $0x68] sm:$0xff] %v775
      %808 = vst [vmem:[%s264 + $0x70] sm:$0xff] %v776
      %809 = vst [vmem:[%s264 + $0x78] sm:$0xff] %v777
      %810 = vst [vmem:[%s264 + $0x80] sm:$0xff] %v778
      %811 = vst [vmem:[%s264 + $0x88] sm:$0xff] %v779
      %812 = vst [vmem:[%s264 + $0x90] sm:$0xff] %v780
      %813 = vst [vmem:[%s264 + $0x98] sm:$0xff] %v781
      %814 = vst [vmem:[%s264 + $0xa0] sm:$0xff] %v782
      %815 = vst [vmem:[%s264 + $0xa8] sm:$0xff] %v783
      %816 = vst [vmem:[%s264 + $0xb0] sm:$0xff] %v784
      %817 = vst [vmem:[%s264 + $0xb8] sm:$0xff] %v785
      %818 = vst [vmem:[%s264 + $0xc0] sm:$0xff] %v786
      %819 = vst [vmem:[%s264 + $0xc8] sm:$0xff] %v787
      %820 = vst [vmem:[%s264 + $0xd0] sm:$0xff] %v788
      %821 = vst [vmem:[%s264 + $0xd8] sm:$0xff] %v789
      %822 = vst [vmem:[%s264 + $0xe0] sm:$0xff] %v790
      %823 = vst [vmem:[%s264 + $0xe8] sm:$0xff] %v791
      %824 = vst [vmem:[%s264 + $0xf0] sm:$0xff] %v792
      %825 = vst [vmem:[%s264 + $0xf8] sm:$0xff] %v793
      %s826 = smul.u32 32, %s19
      %p827 = scmp.lt.s32.totalorder %s826, 63
      %s828 = scalar_select %p827, %s826, 63
      %p829 = scmp.lt.s32.totalorder %s20, 0
      %s830 = scalar_select %p829, %s20, 0
      %s831 = sadd.s32 %s830, %s828
      %s832 = smul.addr %s831, 8
      %s833 = scalar_lea.vmem %s4, %s832
      // Predicated region
      $region37: #{conv_forward.1} parent=35 // pred_check
        %p834 = pneg %p151
      $region38: #{conv_forward.1} parent=35 // pred_check_branch
        %836 = sbr.rel (%p834) target = $region40
      $region39: #{conv_forward.1} parent=35 // pred_region
        %s837 = smul.u32 32, %s19
      $region40: #{conv_forward.1} parent=35 // pred_fallthru
        _
    $region36: #{conv_forward.1} parent=5 // pred_fallthru
      _
    %p838 = scmp.le.s32.totalorder 2, %s10
    // Predicated region
    $region41: #{conv_forward.1} parent=5 // pred_check
      %p839 = pneg %p838
    $region42: #{conv_forward.1} parent=5 // pred_check_branch
      %841 = sbr.rel (%p839) target = $region44
    $region43: #{conv_forward.1} parent=5 // pred_region
      %s842 = ssub.s32 %s10, 2
      // Predicated region
      $region45: #{conv_forward.1} parent=43 // pred_check
        %p843 = pneg %p157
      $region46: #{conv_forward.1} parent=43 // pred_check_branch
        %845 = sbr.rel (%p843) target = $region48
      $region47: #{conv_forward.1} parent=43 // pred_region
        %s846 = smul.u32 32, %s21
        %p847 = scmp.lt.s32.totalorder %s846, 63
        %s848 = scalar_select %p847, %s846, 63
        %p849 = scmp.lt.s32.totalorder %s22, 0
        %s850 = scalar_select %p849, %s22, 0
        %s851 = sadd.s32 %s850, %s848
        %s852 = smul.addr %s851, 8
        %s853 = scalar_lea.vmem %s4, %s852
      $region48: #{conv_forward.1} parent=43 // pred_fallthru
        _
    $region44: #{conv_forward.1} parent=5 // pred_fallthru
      _
  $region6: #{conv_forward.1} parent=0 // loop_footer
    %s14 = sadd.s32 1, %s10
  $region7: #{conv_forward.1} parent=0 // loop_footer_branch
    %9 = sbr.rel target = $region3
  $region8: #{conv_forward.1} parent=0 // loop_exit
    _

</llo_original>
